<compile_context>
chip_gen: v7x
topology: tpu7x:2x2x1
jax: 0.10.0
libtpu: 0.0.40
codegen_flags: <defaults>
</compile_context>

<pallas_src>
import functools
import math

import jax
import jax.numpy as jnp
from jax import lax
from jax.experimental import pallas as pl
from jax.experimental.pallas import tpu as pltpu

LANE = 128
ROW_ALIGN = 16  # bf16 packs 2 rows / sublane -> native (16, 128) tile


def _round_up(x, m):
    return ((x + m - 1) // m) * m


def _pad_axis(a, axis, target):
    pad = target - a.shape[axis]
    if pad == 0:
        return a
    widths = [(0, 0)] * a.ndim
    widths[axis] = (0, pad)
    return jnp.pad(a, widths)


# ---------------------------------------------------------------------------
# Parameter preparation (hoisted out of the per-call path: do this ONCE).
# ---------------------------------------------------------------------------
def prepare_ffn_params(w1_pt, b1, w2_pt, b2, *, weight_dtype=jnp.bfloat16):
    """Transpose, zero-pad to lane multiples, and cast weights once.

    w1_pt: (d_ff, d_model)  -- nn.Linear(d_model, 4*d_model).weight
    b1:    (d_ff,)
    w2_pt: (d_model, d_ff)  -- nn.Linear(4*d_model, d_model).weight
    b2:    (d_model,)
    """
    d_ff, d_model = w1_pt.shape
    assert w2_pt.shape == (d_model, d_ff)
    dm_p = _round_up(d_model, LANE)
    df_p = _round_up(d_ff, LANE)

    w1 = _pad_axis(_pad_axis(jnp.asarray(w1_pt).T.astype(weight_dtype), 0, dm_p), 1, df_p)
    w2 = _pad_axis(_pad_axis(jnp.asarray(w2_pt).T.astype(weight_dtype), 0, df_p), 1, dm_p)
    b1p = _pad_axis(jnp.asarray(b1, jnp.float32).reshape(1, d_ff), 1, df_p)
    b2p = _pad_axis(jnp.asarray(b2, jnp.float32).reshape(1, d_model), 1, dm_p)
    return dict(w1=w1, b1=b1p, w2=w2, b2=b2p, d_model=d_model, d_ff=d_ff)


# ---------------------------------------------------------------------------
# Kernels
# ---------------------------------------------------------------------------
def _ffn_kernel_resident(x_ref, w1_ref, b1_ref, w2_ref, b2_ref, o_ref, acc_ref,
                         *, f_tile, n_f):
    """Weights fully VMEM-resident (constant index maps -> one HBM fetch).

    The d_ff contraction is chunked in-kernel so the f32 'h' intermediate is
    bounded to (row_tile, f_tile).
    """
    # Fold b2 into the accumulator init.
    acc_ref[...] = jnp.broadcast_to(b2_ref[...].astype(jnp.float32), acc_ref.shape)

    if n_f == 1:
        x = x_ref[...].astype(w1_ref.dtype)           # cast to bf16 in-kernel
        h = jnp.dot(x, w1_ref[...], preferred_element_type=jnp.float32)
        h = jnp.maximum(h + b1_ref[...], 0.0)
        acc_ref[...] += jnp.dot(h.astype(w2_ref.dtype), w2_ref[...],
                                preferred_element_type=jnp.float32)
    else:
        def step(j, carry):
            off = pl.multiple_of(j * f_tile, f_tile)
            x = x_ref[...].astype(w1_ref.dtype)        # reload/cast: bounds live range
            h = jnp.dot(x, w1_ref[:, pl.ds(off, f_tile)],
                        preferred_element_type=jnp.float32)
            h = jnp.maximum(h + b1_ref[:, pl.ds(off, f_tile)], 0.0)
            acc_ref[...] += jnp.dot(h.astype(w2_ref.dtype),
                                    w2_ref[pl.ds(off, f_tile), :],
                                    preferred_element_type=jnp.float32)
            return carry
        lax.fori_loop(0, n_f, step, 0, unroll=(n_f <= 8))

    o_ref[...] = acc_ref[...].astype(o_ref.dtype)


def _ffn_kernel_reduce(x_ref, w1_ref, b1_ref, w2_ref, b2_ref, o_ref, acc_ref):
    """Fallback: d_ff is a reduction grid axis (weight chunks streamed)."""
    k = pl.program_id(1)

    @pl.when(k == 0)
    def _():
        acc_ref[...] = jnp.broadcast_to(b2_ref[...].astype(jnp.float32),
                                        acc_ref.shape)

    x = x_ref[...].astype(w1_ref.dtype)                # cast to bf16 in-kernel
    h = jnp.dot(x, w1_ref[...], preferred_element_type=jnp.float32)
    h = jnp.maximum(h + b1_ref[...], 0.0)
    acc_ref[...] += jnp.dot(h.astype(w2_ref.dtype), w2_ref[...],
                            preferred_element_type=jnp.float32)

    @pl.when(k == pl.num_programs(1) - 1)
    def _():
        o_ref[...] = acc_ref[...].astype(o_ref.dtype)


# ---------------------------------------------------------------------------
# Tile planning against the VMEM budget
# ---------------------------------------------------------------------------
def _resident_bytes(rt, ft, dm_p, df_p, x_b, out_b, w_b):
    weights = 2 * 2 * dm_p * df_p * w_b          # W1+W2 (double-buffer allocation)
    biases = 2 * (df_p + dm_p) * 4
    xblk = 2 * rt * dm_p * x_b
    oblk = 2 * rt * dm_p * out_b
    acc = rt * dm_p * 4
    work = rt * ft * 6 + rt * dm_p * 4           # h chunk (f32 + bf16) + headroom
    return weights + biases + xblk + oblk + acc + work


def _reduce_bytes(rt, ft, dm_p, df_p, x_b, out_b, w_b):
    weights = 2 * 2 * dm_p * ft * w_b            # W1/W2 chunk blocks, double-buffered
    biases = 2 * (ft + dm_p) * 4
    xblk = 2 * rt * dm_p * x_b
    oblk = 2 * rt * dm_p * out_b
    acc = rt * dm_p * 4
    work = rt * ft * 6 + rt * dm_p * 4
    return weights + biases + xblk + oblk + acc + work


def _choose_plan(n_rows, dm_p, df_p, x_b, out_b, w_b,
                 row_tile_req, f_tile_req, budget):
    rows_cap = _round_up(max(n_rows, 1), ROW_ALIGN)

    def fix_row(rt):
        return max(ROW_ALIGN, min(_round_up(rt, ROW_ALIGN), rows_cap))

    def fix_f(ft):
        ft = max(LANE, min((ft // LANE) * LANE, df_p))
        while df_p % ft:
            ft -= LANE
        return ft

    row_tile = fix_row(row_tile_req)
    f_tile = fix_f(f_tile_req)

    # Preferred: weights fully VMEM-resident (streamed from HBM exactly once).
    rt = row_tile
    while True:
        if _resident_bytes(rt, f_tile, dm_p, df_p, x_b, out_b, w_b) <= budget:
            return "resident", rt, f_tile
        nrt = fix_row(rt // 2)
        if nrt == rt:
            break
        rt = nrt

    # Fallback (v7x / very large d_model, d_ff): stream weight chunks over a
    # reduction grid axis; shrink tiles until the plan fits.
    rt, ft = row_tile, f_tile
    while True:
        if _reduce_bytes(rt, ft, dm_p, df_p, x_b, out_b, w_b) <= budget:
            return "reduce", rt, ft
        if ft > LANE:
            ft = fix_f(ft // 2)
        elif fix_row(rt // 2) != rt:
            rt = fix_row(rt // 2)
        else:
            return "reduce", rt, ft   # best effort
    # TODO(synk): for very large d_model on v7x, additionally tile the output
    # (d_model) dimension so acc/out blocks are not full width.


# ---------------------------------------------------------------------------
# Forward wrapper
# ---------------------------------------------------------------------------
def positionwise_feed_forward(x, params, *, row_tile=1024, f_tile=512,
                              out_dtype=None,
                              vmem_limit_bytes=48 * 1024 * 1024):
    """Fused position-wise FFN.  `params` comes from prepare_ffn_params()."""
    w1, b1, w2, b2 = params["w1"], params["b1"], params["w2"], params["b2"]
    d_model, d_ff = params["d_model"], params["d_ff"]
    dm_p, df_p = w1.shape
    B, S, dmx = x.shape
    assert dmx == d_model
    out_dtype = x.dtype if out_dtype is None else out_dtype
    n_rows = B * S

    plan, rt, ft = _choose_plan(
        n_rows, dm_p, df_p,
        jnp.dtype(x.dtype).itemsize, jnp.dtype(out_dtype).itemsize,
        jnp.dtype(w1.dtype).itemsize,
        row_tile, f_tile, int(0.85 * vmem_limit_bytes))

    rows_p = _round_up(n_rows, rt)
    # x stays in its native dtype (cast to bf16 inside the kernel).
    x2d = _pad_axis(_pad_axis(x.reshape(n_rows, d_model), 1, dm_p), 0, rows_p)

    cost = pl.CostEstimate(
        flops=2 * 2 * rows_p * dm_p * df_p,
        transcendentals=0,
        bytes_accessed=(x2d.size * x2d.dtype.itemsize
                        + w1.size * w1.dtype.itemsize
                        + w2.size * w2.dtype.itemsize
                        + b1.size * 4 + b2.size * 4
                        + rows_p * dm_p * jnp.dtype(out_dtype).itemsize),
    )

    if plan == "resident":
        n_f = df_p // ft
        kernel = functools.partial(_ffn_kernel_resident, f_tile=ft, n_f=n_f)
        grid_spec = pltpu.PrefetchScalarGridSpec(
            num_scalar_prefetch=0,
            grid=(rows_p // rt,),
            in_specs=[
                pl.BlockSpec((rt, dm_p), lambda i: (i, 0)),    # x rows
                pl.BlockSpec((dm_p, df_p), lambda i: (0, 0)),  # W1 (resident)
                pl.BlockSpec((1, df_p), lambda i: (0, 0)),     # b1 (resident)
                pl.BlockSpec((df_p, dm_p), lambda i: (0, 0)),  # W2 (resident)
                pl.BlockSpec((1, dm_p), lambda i: (0, 0)),     # b2 (resident)
            ],
            out_specs=pl.BlockSpec((rt, dm_p), lambda i: (i, 0)),
            scratch_shapes=[pltpu.VMEM((rt, dm_p), jnp.float32)],
        )
        dim_sem = ("parallel",)
    else:
        nk = df_p // ft

        def serp(i, k):
            # serpentine: k, ..., nk-1 on even row tiles; reversed on odd ones,
            # so the weight block at a row-tile transition is a free revisit.
            return k + (i % 2) * (nk - 1 - 2 * k)

        kernel = _ffn_kernel_reduce
        grid_spec = pltpu.PrefetchScalarGridSpec(
            num_scalar_prefetch=0,
            grid=(rows_p // rt, nk),
            in_specs=[
                pl.BlockSpec((rt, dm_p), lambda i, k: (i, 0)),          # x rows
                pl.BlockSpec((dm_p, ft), lambda i, k: (0, serp(i, k))),  # W1 cols
                pl.BlockSpec((1, ft), lambda i, k: (0, serp(i, k))),     # b1
                pl.BlockSpec((ft, dm_p), lambda i, k: (serp(i, k), 0)),  # W2 rows
                pl.BlockSpec((1, dm_p), lambda i, k: (0, 0)),            # b2
            ],
            out_specs=pl.BlockSpec((rt, dm_p), lambda i, k: (i, 0)),
            scratch_shapes=[pltpu.VMEM((rt, dm_p), jnp.float32)],
        )
        dim_sem = ("parallel", "arbitrary")

    out2d = pl.pallas_call(
        kernel,
        out_shape=jax.ShapeDtypeStruct((rows_p, dm_p), out_dtype),
        grid_spec=grid_spec,
        compiler_params=pltpu.CompilerParams(
            dimension_semantics=dim_sem,
            vmem_limit_bytes=vmem_limit_bytes),
        cost_estimate=cost,
    )(x2d, w1, b1, w2, b2)

    return out2d[:n_rows, :d_model].reshape(B, S, d_model)


# ---------------------------------------------------------------------------
# Demo / correctness check
# ---------------------------------------------------------------------------
def xavier_uniform(key, fan_out, fan_in, dtype=jnp.float32):
    # matches nn.init.xavier_uniform_ on a (fan_out, fan_in) weight
    bound = math.sqrt(6.0 / (fan_in + fan_out))
    return jax.random.uniform(key, (fan_out, fan_in), dtype, -bound, bound)


if __name__ == "__main__":
    d_model = 128           # lane-dense width (>= 128)
    d_ff = 4 * d_model      # 512
    batch, seq = 2, 8

    key = jax.random.PRNGKey(0)
    kx, k1, k2 = jax.random.split(key, 3)

    # Parameters (deterministic init matching the PyTorch module's __init__).
    W1 = xavier_uniform(k1, d_ff, d_model)   # nn.Linear(d_model, 4*d_model).weight
    b1 = jnp.zeros((d_ff,), jnp.float32)     # bias init constant 0
    W2 = xavier_uniform(k2, d_model, d_ff)   # nn.Linear(4*d_model, d_model).weight
    b2 = jnp.zeros((d_model,), jnp.float32)

    # Weight prep hoisted out of the per-call path (done once at init).
    params = prepare_ffn_params(W1, b1, W2, b2)

    x = jax.random.normal(kx, (batch, seq, d_model), jnp.float32)

    out = positionwise_feed_forward(x, params)
    out = jax.block_until_ready(out)
    assert out.shape == (batch, seq, d_model)

    # f32 reference (kernel computes in bf16 with f32 accumulation → loose tol).
    ref = jnp.maximum(x @ W1.T + b1, 0.0) @ W2.T + b2
    err = jnp.max(jnp.abs(out - ref))
    assert bool(jnp.isfinite(err)) and float(err) < 5e-2, f"mismatch vs reference: {err}"

    print("KERNEL_OK")
</pallas_src>

<mosaic_0001>
module attributes {stable_mosaic.version = 11 : i64} {
  func.func @_ffn_kernel_resident(%arg0: i32, %arg1: memref<16x128xf32, #tpu.memory_space<vmem>>, %arg2: memref<128x512xbf16, #tpu.memory_space<vmem>>, %arg3: memref<1x512xf32, #tpu.memory_space<vmem>>, %arg4: memref<512x128xbf16, #tpu.memory_space<vmem>>, %arg5: memref<1x128xf32, #tpu.memory_space<vmem>>, %arg6: memref<16x128xf32, #tpu.memory_space<vmem>>, %arg7: memref<16x128xf32, #tpu.memory_space<vmem>>) attributes {dimension_semantics = [#tpu.dimension_semantics<parallel>], iteration_bounds = array<i64: 1>, scalar_prefetch = 0 : i64, scratch_operands = 1 : i64, tpu.core_type = #tpu.core_type<tc>, window_params = [{transform_indices = @transform_0, window_bounds = array<i64: 16, 128>}, {pipeline_mode = #tpu.pipeline_mode<synchronous>, transform_indices = @transform_1, window_bounds = array<i64: 128, 512>}, {pipeline_mode = #tpu.pipeline_mode<synchronous>, transform_indices = @transform_2, window_bounds = array<i64: 1, 512>}, {pipeline_mode = #tpu.pipeline_mode<synchronous>, transform_indices = @transform_3, window_bounds = array<i64: 512, 128>}, {pipeline_mode = #tpu.pipeline_mode<synchronous>, transform_indices = @transform_4, window_bounds = array<i64: 1, 128>}, {transform_indices = @transform_5, window_bounds = array<i64: 16, 128>}]} {
    %c0 = arith.constant 0 : index
    %c0_0 = arith.constant 0 : index
    %0 = vector.load %arg5[%c0, %c0_0] : memref<1x128xf32, #tpu.memory_space<vmem>>, vector<1x128xf32>
    %1 = vector.shape_cast %0 : vector<1x128xf32> to vector<1x128xf32>
    %2 = vector.broadcast %1 : vector<1x128xf32> to vector<16x128xf32>
    %c0_1 = arith.constant 0 : index
    %c0_2 = arith.constant 0 : index
    %3 = vector.load %arg7[%c0_1, %c0_2] : memref<16x128xf32, #tpu.memory_space<vmem>>, vector<16x128xf32>
    tpu.vector_store %arg7[%c0_1, %c0_2], %2 {strides = array<i32>} : memref<16x128xf32, #tpu.memory_space<vmem>>, vector<16x128xf32>,
    %c0_3 = arith.constant 0 : index
    %c0_4 = arith.constant 0 : index
    %4 = vector.load %arg1[%c0_3, %c0_4] : memref<16x128xf32, #tpu.memory_space<vmem>>, vector<16x128xf32>
    %5 = arith.truncf %4 : vector<16x128xf32> to vector<16x128xbf16>
    %c0_5 = arith.constant 0 : index
    %c0_6 = arith.constant 0 : index
    %6 = vector.load %arg2[%c0_5, %c0_6] : memref<128x512xbf16, #tpu.memory_space<vmem>>, vector<128x512xbf16>
    %cst = arith.constant dense<0.000000e+00> : vector<16x512xf32>
    %7 = tpu.matmul %5, %6, %cst {dimension_numbers = #tpu.dot_dimension_numbers<[1], [0], [0], [1], [0, 0, 1, 1], [], []>} : vector<16x128xbf16>, vector<128x512xbf16>, vector<16x512xf32> -> vector<16x512xf32>
    %c0_7 = arith.constant 0 : index
    %c0_8 = arith.constant 0 : index
    %8 = vector.load %arg3[%c0_7, %c0_8] : memref<1x512xf32, #tpu.memory_space<vmem>>, vector<1x512xf32>
    %9 = vector.broadcast %8 : vector<1x512xf32> to vector<16x512xf32>
    %10 = arith.addf %7, %9 : vector<16x512xf32>
    %cst_9 = arith.constant 0.000000e+00 : f32
    %11 = vector.broadcast %cst_9 : f32 to vector<16x512xf32>
    %12 = arith.maximumf %10, %11 : vector<16x512xf32>
    %c0_10 = arith.constant 0 : index
    %c0_11 = arith.constant 0 : index
    %13 = vector.load %arg7[%c0_10, %c0_11] : memref<16x128xf32, #tpu.memory_space<vmem>>, vector<16x128xf32>
    %14 = arith.truncf %12 : vector<16x512xf32> to vector<16x512xbf16>
    %c0_12 = arith.constant 0 : index
    %c0_13 = arith.constant 0 : index
    %15 = vector.load %arg4[%c0_12, %c0_13] : memref<512x128xbf16, #tpu.memory_space<vmem>>, vector<512x128xbf16>
    %cst_14 = arith.constant dense<0.000000e+00> : vector<16x128xf32>
    %16 = tpu.matmul %14, %15, %cst_14 {dimension_numbers = #tpu.dot_dimension_numbers<[1], [0], [0], [1], [0, 0, 1, 1], [], []>} : vector<16x512xbf16>, vector<512x128xbf16>, vector<16x128xf32> -> vector<16x128xf32>
    %17 = arith.addf %13, %16 : vector<16x128xf32>
    %c0_15 = arith.constant 0 : index
    %c0_16 = arith.constant 0 : index
    %18 = vector.load %arg7[%c0_15, %c0_16] : memref<16x128xf32, #tpu.memory_space<vmem>>, vector<16x128xf32>
    tpu.vector_store %arg7[%c0_15, %c0_16], %17 {strides = array<i32>} : memref<16x128xf32, #tpu.memory_space<vmem>>, vector<16x128xf32>,
    %c0_17 = arith.constant 0 : index
    %c0_18 = arith.constant 0 : index
    %19 = vector.load %arg7[%c0_17, %c0_18] : memref<16x128xf32, #tpu.memory_space<vmem>>, vector<16x128xf32>
    %c0_19 = arith.constant 0 : index
    %c0_20 = arith.constant 0 : index
    %20 = vector.load %arg6[%c0_19, %c0_20] : memref<16x128xf32, #tpu.memory_space<vmem>>, vector<16x128xf32>
    tpu.vector_store %arg6[%c0_19, %c0_20], %19 {strides = array<i32>} : memref<16x128xf32, #tpu.memory_space<vmem>>, vector<16x128xf32>,
    return
  }
  func.func @transform_0(%arg0: i32) -> (i32, i32) {
    %c0_i32 = arith.constant 0 : i32
    %c0_i32_0 = arith.constant 0 : i32
    return %arg0, %c0_i32 : i32, i32
  }
  func.func @transform_1(%arg0: i32) -> (i32, i32) {
    %c0_i32 = arith.constant 0 : i32
    %c0_i32_0 = arith.constant 0 : i32
    %c0_i32_1 = arith.constant 0 : i32
    return %c0_i32, %c0_i32_0 : i32, i32
  }
  func.func @transform_2(%arg0: i32) -> (i32, i32) {
    %c0_i32 = arith.constant 0 : i32
    %c0_i32_0 = arith.constant 0 : i32
    %c0_i32_1 = arith.constant 0 : i32
    return %c0_i32, %c0_i32_0 : i32, i32
  }
  func.func @transform_3(%arg0: i32) -> (i32, i32) {
    %c0_i32 = arith.constant 0 : i32
    %c0_i32_0 = arith.constant 0 : i32
    %c0_i32_1 = arith.constant 0 : i32
    return %c0_i32, %c0_i32_0 : i32, i32
  }
  func.func @transform_4(%arg0: i32) -> (i32, i32) {
    %c0_i32 = arith.constant 0 : i32
    %c0_i32_0 = arith.constant 0 : i32
    %c0_i32_1 = arith.constant 0 : i32
    return %c0_i32, %c0_i32_0 : i32, i32
  }
  func.func @transform_5(%arg0: i32) -> (i32, i32) {
    %c0_i32 = arith.constant 0 : i32
    %c0_i32_0 = arith.constant 0 : i32
    return %arg0, %c0_i32 : i32, i32
  }
}

</mosaic_0001>

<llo_original>
// kernel: tpu_custom_call.1
$region0: #{tpu_custom_call.1}
  #allocation0 [shape = 'u32[]', space=smem, size = 0x4, offset = 0x4, fixed_abs, tag = 'smem constant byte address 0x4 - core index']
  #allocation1 [shape = 'u32[144,128]{1,0:T(1,128)}', space=vmem, size = 0x12000, scoped, tag = 'internal scratch']
  #allocation2 [shape = 'f32[16,128]{1,0:T(8,128)}', space=vmem, size = 0x2000, scoped, tag = 'scratch operand']
  %s0 = inlined_call_operand.hbm [shape: f32[16,128], index: 0, kind: input, shape index: {}]
  %s1 = inlined_call_operand.hbm [shape: bf16[128,512], index: 1, kind: input, shape index: {}]
  %s2 = inlined_call_operand.vmem [shape: f32[1,512], index: 2, kind: input, shape index: {}]
  %s3 = inlined_call_operand.hbm [shape: bf16[512,128], index: 3, kind: input, shape index: {}]
  %s4 = inlined_call_operand.vmem [shape: f32[1,128], index: 4, kind: input, shape index: {}]
  %s5 = inlined_call_operand.hbm [shape: f32[16,128], index: 5, kind: output, shape index: {}]
  %s6 = sld [smem:[#allocation0]]
  $region42: #{tpu_custom_call.1} parent=0
    _
  %s8 = ssub.s32 1, %s6
  %s9 = scalar_select 0, %s8, %s6
  $region1: #{tpu_custom_call.1} parent=0
    #allocation3 [shape = 'u8[8192]{0}', space=vmem, size = 0x2000, scoped, tag = 'input window, operand 0, single buffered']
    #allocation4 [shape = 's32[1]{0}', space=sflag, size = 0x4, scoped, tag = 'scoped memory for tpu_custom_call.1']
    #allocation5 [shape = 's32[1]{0}', space=sflag, size = 0x4, scoped, tag = 'scoped memory for tpu_custom_call.1']
    #allocation6 [shape = 'u8[131072]{0}', space=vmem, size = 0x20000, scoped, tag = 'input window, operand 1, single buffered']
    #allocation7 [shape = 's32[1]{0}', space=sflag, size = 0x4, scoped, tag = 'scoped memory for tpu_custom_call.1']
    #allocation8 [shape = 'u8[131072]{0}', space=vmem, size = 0x20000, scoped, tag = 'input window, operand 3, single buffered']
    #allocation9 [shape = 'u8[8192]{0}', space=vmem, size = 0x2000, scoped, tag = 'output window, operand 0, single buffered']
    %10 = vsyncpa [#allocation4], 0
    %11 = vsyncpa [#allocation7], 0
    %12 = vsyncpa [#allocation5], 0
    // Predicated region
    $region2: #{tpu_custom_call.1} parent=1 // pred_check
      _
    $region3: #{tpu_custom_call.1} parent=1 // pred_check_branch
      %14 = sbr.rel (0) target = $region5
    $region4: #{tpu_custom_call.1} parent=1 // pred_region
      %s16 = ssub.s32 256, 256
      %17 = vsyncadd [#allocation4], %s16
      %s18 = sshll.u32 [#allocation3], 4
      %s19 = int_to_ptr.vmem [resolvable:$true] %s18
      %24 = dma.hbm_to_vmem [thread:$0]  %s0, 256, %s19, [#allocation4], 128, 128, 8
    $region5: #{tpu_custom_call.1} parent=1 // pred_fallthru
      _
    // Predicated region
    $region6: #{tpu_custom_call.1} parent=1 // pred_check
      _
    $region7: #{tpu_custom_call.1} parent=1 // pred_check_branch
      %26 = sbr.rel (0) target = $region9
    $region8: #{tpu_custom_call.1} parent=1 // pred_region
      %s28 = ssub.s32 4096, 4096
      %29 = vsyncadd [#allocation7], %s28
      %s30 = sshll.u32 [#allocation6], 4
      %s31 = int_to_ptr.vmem [resolvable:$true] %s30
      %36 = dma.hbm_to_vmem [thread:$0]  %s1, 4096, %s31, [#allocation7], 256, 256, 16
    $region9: #{tpu_custom_call.1} parent=1 // pred_fallthru
      _
    // Predicated region
    $region10: #{tpu_custom_call.1} parent=1 // pred_check
      _
    $region11: #{tpu_custom_call.1} parent=1 // pred_check_branch
      %38 = sbr.rel (0) target = $region13
    $region12: #{tpu_custom_call.1} parent=1 // pred_region
      _
    $region13: #{tpu_custom_call.1} parent=1 // pred_fallthru
      _
    // Predicated region
    $region14: #{tpu_custom_call.1} parent=1 // pred_check
      _
    $region15: #{tpu_custom_call.1} parent=1 // pred_check_branch
      %40 = sbr.rel (0) target = $region17
    $region16: #{tpu_custom_call.1} parent=1 // pred_region
      %s42 = ssub.s32 4096, 4096
      %43 = vsyncadd [#allocation7], %s42
      %s44 = sshll.u32 [#allocation8], 4
      %s45 = int_to_ptr.vmem [resolvable:$true] %s44
      %50 = dma.hbm_to_vmem [thread:$0]  %s3, 4096, %s45, [#allocation7], 64, 64, 4
    $region17: #{tpu_custom_call.1} parent=1 // pred_fallthru
      _
    // Predicated region
    $region18: #{tpu_custom_call.1} parent=1 // pred_check
      _
    $region19: #{tpu_custom_call.1} parent=1 // pred_check_branch
      %52 = sbr.rel (0) target = $region21
    $region20: #{tpu_custom_call.1} parent=1 // pred_region
      _
    $region21: #{tpu_custom_call.1} parent=1 // pred_fallthru
      _
    // Predicated region
    $region22: #{tpu_custom_call.1} parent=1 // pred_check
      _
    $region23: #{tpu_custom_call.1} parent=1 // pred_check_branch
      %54 = sbr.rel (0) target = $region25
    $region24: #{tpu_custom_call.1} parent=1 // pred_region
      %55 = dma.done [#allocation4], 256
    $region25: #{tpu_custom_call.1} parent=1 // pred_fallthru
      _
    // Predicated region
    $region26: #{tpu_custom_call.1} parent=1 // pred_check
      _
    $region27: #{tpu_custom_call.1} parent=1 // pred_check_branch
      %57 = sbr.rel (0) target = $region29
    $region28: #{tpu_custom_call.1} parent=1 // pred_region
      %58 = dma.done [#allocation7], 4096
    $region29: #{tpu_custom_call.1} parent=1 // pred_fallthru
      _
    // Predicated region
    $region30: #{tpu_custom_call.1} parent=1 // pred_check
      _
    $region31: #{tpu_custom_call.1} parent=1 // pred_check_branch
      %60 = sbr.rel (0) target = $region33
    $region32: #{tpu_custom_call.1} parent=1 // pred_region
      %61 = dma.done [#allocation7], 4096
    $region33: #{tpu_custom_call.1} parent=1 // pred_fallthru
      _
    %v63 = vld [vmem:[%s4] sm:$0x1]
    %v65 = vlaneseq
    %v66 = vshrl.u32 %v65, 7
    %v67 = vsub.s32 0, %v66
    %v68 = vrot.slane %v63, %v67
    %70 = vst [vmem:[#allocation2] sm:$0xff] %v68
    %71 = vst [vmem:[#allocation2 + $0x8] sm:$0xff] %v68
    %v72 = vld [vmem:[#allocation3] sm:$0xff]
    %v73 = vld [vmem:[#allocation3 + $0x8] sm:$0xff]
    %v74 = vpack.c.bf16 %v73, %v72
    %v75 = vld [vmem:[#allocation6] sm:$0xff]
    %v76 = vld [vmem:[#allocation6 + $0x8] sm:$0xff]
    %v77 = vld [vmem:[#allocation6 + $0x10] sm:$0xff]
    %v78 = vld [vmem:[#allocation6 + $0x18] sm:$0xff]
    %v79 = vld [vmem:[#allocation6 + $0x20] sm:$0xff]
    %v80 = vld [vmem:[#allocation6 + $0x28] sm:$0xff]
    %v81 = vld [vmem:[#allocation6 + $0x30] sm:$0xff]
    %v82 = vld [vmem:[#allocation6 + $0x38] sm:$0xff]
    %v83 = vld [vmem:[#allocation6 + $0x40] sm:$0xff]
    %v84 = vld [vmem:[#allocation6 + $0x48] sm:$0xff]
    %v85 = vld [vmem:[#allocation6 + $0x50] sm:$0xff]
    %v86 = vld [vmem:[#allocation6 + $0x58] sm:$0xff]
    %v87 = vld [vmem:[#allocation6 + $0x60] sm:$0xff]
    %v88 = vld [vmem:[#allocation6 + $0x68] sm:$0xff]
    %v89 = vld [vmem:[#allocation6 + $0x70] sm:$0xff]
    %v90 = vld [vmem:[#allocation6 + $0x78] sm:$0xff]
    %v91 = vld [vmem:[#allocation6 + $0x80] sm:$0xff]
    %v92 = vld [vmem:[#allocation6 + $0x88] sm:$0xff]
    %v93 = vld [vmem:[#allocation6 + $0x90] sm:$0xff]
    %v94 = vld [vmem:[#allocation6 + $0x98] sm:$0xff]
    %v95 = vld [vmem:[#allocation6 + $0xa0] sm:$0xff]
    %v96 = vld [vmem:[#allocation6 + $0xa8] sm:$0xff]
    %v97 = vld [vmem:[#allocation6 + $0xb0] sm:$0xff]
    %v98 = vld [vmem:[#allocation6 + $0xb8] sm:$0xff]
    %v99 = vld [vmem:[#allocation6 + $0xc0] sm:$0xff]
    %v100 = vld [vmem:[#allocation6 + $0xc8] sm:$0xff]
    %v101 = vld [vmem:[#allocation6 + $0xd0] sm:$0xff]
    %v102 = vld [vmem:[#allocation6 + $0xd8] sm:$0xff]
    %v103 = vld [vmem:[#allocation6 + $0xe0] sm:$0xff]
    %v104 = vld [vmem:[#allocation6 + $0xe8] sm:$0xff]
    %v105 = vld [vmem:[#allocation6 + $0xf0] sm:$0xff]
    %v106 = vld [vmem:[#allocation6 + $0xf8] sm:$0xff]
    %v107 = vld [vmem:[%s2] sm:$0xf]
    %v109 = vlaneseq
    %v110 = vshrl.u32 %v109, 7
    %v111 = vsub.s32 0, %v110
    %v112 = vrot.slane %v107, %v111
    %v113 = vlaneseq
    %v114 = vshrl.u32 %v113, 7
    %v115 = vsub.s32 1, %v114
    %v116 = vrot.slane %v107, %v115
    %v117 = vlaneseq
    %v118 = vshrl.u32 %v117, 7
    %v119 = vsub.s32 2, %v118
    %v120 = vrot.slane %v107, %v119
    %v121 = vlaneseq
    %v122 = vshrl.u32 %v121, 7
    %v123 = vsub.s32 3, %v122
    %v124 = vrot.slane %v107, %v123
    %v161 = vunpack.c.l.b16 %v75
    %v162 = vunpack.c.h.b16 %v75
    %v163 = vunpack.c.l.b16 %v76
    %v164 = vunpack.c.h.b16 %v76
    %v165 = vunpack.c.l.b16 %v77
    %v166 = vunpack.c.h.b16 %v77
    %v167 = vunpack.c.l.b16 %v78
    %v168 = vunpack.c.h.b16 %v78
    %v169 = vunpack.c.l.b16 %v79
    %v170 = vunpack.c.h.b16 %v79
    %v171 = vunpack.c.l.b16 %v80
    %v172 = vunpack.c.h.b16 %v80
    %v173 = vunpack.c.l.b16 %v81
    %v174 = vunpack.c.h.b16 %v81
    %v175 = vunpack.c.l.b16 %v82
    %v176 = vunpack.c.h.b16 %v82
    %v177 = vunpack.c.l.b16 %v83
    %v178 = vunpack.c.h.b16 %v83
    %v179 = vunpack.c.l.b16 %v84
    %v180 = vunpack.c.h.b16 %v84
    %v181 = vunpack.c.l.b16 %v85
    %v182 = vunpack.c.h.b16 %v85
    %v183 = vunpack.c.l.b16 %v86
    %v184 = vunpack.c.h.b16 %v86
    %v185 = vunpack.c.l.b16 %v87
    %v186 = vunpack.c.h.b16 %v87
    %v187 = vunpack.c.l.b16 %v88
    %v188 = vunpack.c.h.b16 %v88
    %v189 = vunpack.c.l.b16 %v89
    %v190 = vunpack.c.h.b16 %v89
    %v191 = vunpack.c.l.b16 %v90
    %v192 = vunpack.c.h.b16 %v90
    %v193 = vunpack.c.l.b16 %v91
    %v194 = vunpack.c.h.b16 %v91
    %v195 = vunpack.c.l.b16 %v92
    %v196 = vunpack.c.h.b16 %v92
    %v197 = vunpack.c.l.b16 %v93
    %v198 = vunpack.c.h.b16 %v93
    %v199 = vunpack.c.l.b16 %v94
    %v200 = vunpack.c.h.b16 %v94
    %v201 = vunpack.c.l.b16 %v95
    %v202 = vunpack.c.h.b16 %v95
    %v203 = vunpack.c.l.b16 %v96
    %v204 = vunpack.c.h.b16 %v96
    %v205 = vunpack.c.l.b16 %v97
    %v206 = vunpack.c.h.b16 %v97
    %v207 = vunpack.c.l.b16 %v98
    %v208 = vunpack.c.h.b16 %v98
    %v209 = vunpack.c.l.b16 %v99
    %v210 = vunpack.c.h.b16 %v99
    %v211 = vunpack.c.l.b16 %v100
    %v212 = vunpack.c.h.b16 %v100
    %v213 = vunpack.c.l.b16 %v101
    %v214 = vunpack.c.h.b16 %v101
    %v215 = vunpack.c.l.b16 %v102
    %v216 = vunpack.c.h.b16 %v102
    %v217 = vunpack.c.l.b16 %v103
    %v218 = vunpack.c.h.b16 %v103
    %v219 = vunpack.c.l.b16 %v104
    %v220 = vunpack.c.h.b16 %v104
    %v221 = vunpack.c.l.b16 %v105
    %v222 = vunpack.c.h.b16 %v105
    %v223 = vunpack.c.l.b16 %v106
    %v224 = vunpack.c.h.b16 %v106
    %v225 = vpack.c.b16 %v165, %v161
    %v226 = vpack.c.b16 %v166, %v162
    %v227 = vpack.c.b16 %v167, %v163
    %v228 = vpack.c.b16 %v168, %v164
    %v229 = vpack.c.b16 %v173, %v169
    %v230 = vpack.c.b16 %v174, %v170
    %v231 = vpack.c.b16 %v175, %v171
    %v232 = vpack.c.b16 %v176, %v172
    %v233 = vpack.c.b16 %v181, %v177
    %v234 = vpack.c.b16 %v182, %v178
    %v235 = vpack.c.b16 %v183, %v179
    %v236 = vpack.c.b16 %v184, %v180
    %v237 = vpack.c.b16 %v189, %v185
    %v238 = vpack.c.b16 %v190, %v186
    %v239 = vpack.c.b16 %v191, %v187
    %v240 = vpack.c.b16 %v192, %v188
    %v241 = vpack.c.b16 %v197, %v193
    %v242 = vpack.c.b16 %v198, %v194
    %v243 = vpack.c.b16 %v199, %v195
    %v244 = vpack.c.b16 %v200, %v196
    %v245 = vpack.c.b16 %v205, %v201
    %v246 = vpack.c.b16 %v206, %v202
    %v247 = vpack.c.b16 %v207, %v203
    %v248 = vpack.c.b16 %v208, %v204
    %v249 = vpack.c.b16 %v213, %v209
    %v250 = vpack.c.b16 %v214, %v210
    %v251 = vpack.c.b16 %v215, %v211
    %v252 = vpack.c.b16 %v216, %v212
    %v253 = vpack.c.b16 %v221, %v217
    %v254 = vpack.c.b16 %v222, %v218
    %v255 = vpack.c.b16 %v223, %v219
    %v256 = vpack.c.b16 %v224, %v220
    %289 = vmatprep.subr.bf16.mxu0 %v226
    %290 = vmatpush1.bf16.msra.mxu0 %v225
    %291 = vmatprep.subr.bf16.mxu0 %v230
    %292 = vmatpush1.bf16.msra.mxu0 %v229
    %293 = vmatprep.subr.bf16.mxu0 %v234
    %294 = vmatpush1.bf16.msra.mxu0 %v233
    %295 = vmatprep.subr.bf16.mxu0 %v238
    %296 = vmatpush1.bf16.msra.mxu0 %v237
    %297 = vmatprep.subr.bf16.mxu0 %v242
    %298 = vmatpush1.bf16.msra.mxu0 %v241
    %299 = vmatprep.subr.bf16.mxu0 %v246
    %300 = vmatpush1.bf16.msra.mxu0 %v245
    %301 = vmatprep.subr.bf16.mxu0 %v250
    %302 = vmatpush1.bf16.msra.mxu0 %v249
    %303 = vmatprep.subr.bf16.mxu0 %v254
    %304 = vmatpush1.bf16.msra.mxu0 %v253
    %305 = vmatprep.subr.bf16.mxu0 0
    %306 = vmatpush1.bf16.msra.mxu0 0
    %307 = vmatprep.subr.bf16.mxu0 0
    %308 = vmatpush1.bf16.msra.mxu0 0
    %309 = vmatprep.subr.bf16.mxu0 0
    %310 = vmatpush1.bf16.msra.mxu0 0
    %311 = vmatprep.subr.bf16.mxu0 0
    %312 = vmatpush1.bf16.msra.mxu0 0
    %313 = vmatprep.subr.bf16.mxu0 0
    %314 = vmatpush1.bf16.msra.mxu0 0
    %315 = vmatprep.subr.bf16.mxu0 0
    %316 = vmatpush1.bf16.msra.mxu0 0
    %317 = vmatprep.subr.bf16.mxu0 0
    %318 = vmatpush1.bf16.msra.mxu0 0
    %319 = vmatprep.subr.bf16.mxu0 0
    %320 = vmatpush1.bf16.msra.mxu0 0
    %321 = vmatprep.mubr.bf16.mxu0 0
    %322 = vmatmul.mubr.bf16.gmra.mrb[0].mxu0 %v74
    %v323 = vpop.f32.mrb[0].mxu0
    %v324 = vadd.f32 %v112, %v323
    %v325 = vpop.f32.mrb[0].mxu0
    %v326 = vadd.f32 %v116, %v325
    %v327 = vpop.f32.mrb[0].mxu0
    %v328 = vadd.f32 %v112, %v327
    %v329 = vpop.f32.mrb[0].mxu0
    %v330 = vadd.f32 %v116, %v329
    %331 = vdwg.mxu0
    %332 = vmatprep.subr.bf16.mxu0 %v228
    %333 = vmatpush1.bf16.msra.mxu0 %v227
    %334 = vmatprep.subr.bf16.mxu0 %v232
    %335 = vmatpush1.bf16.msra.mxu0 %v231
    %336 = vmatprep.subr.bf16.mxu0 %v236
    %337 = vmatpush1.bf16.msra.mxu0 %v235
    %338 = vmatprep.subr.bf16.mxu0 %v240
    %339 = vmatpush1.bf16.msra.mxu0 %v239
    %340 = vmatprep.subr.bf16.mxu0 %v244
    %341 = vmatpush1.bf16.msra.mxu0 %v243
    %342 = vmatprep.subr.bf16.mxu0 %v248
    %343 = vmatpush1.bf16.msra.mxu0 %v247
    %344 = vmatprep.subr.bf16.mxu0 %v252
    %345 = vmatpush1.bf16.msra.mxu0 %v251
    %346 = vmatprep.subr.bf16.mxu0 %v256
    %347 = vmatpush1.bf16.msra.mxu0 %v255
    %348 = vmatprep.subr.bf16.mxu0 0
    %349 = vmatpush1.bf16.msra.mxu0 0
    %350 = vmatprep.subr.bf16.mxu0 0
    %351 = vmatpush1.bf16.msra.mxu0 0
    %352 = vmatprep.subr.bf16.mxu0 0
    %353 = vmatpush1.bf16.msra.mxu0 0
    %354 = vmatprep.subr.bf16.mxu0 0
    %355 = vmatpush1.bf16.msra.mxu0 0
    %356 = vmatprep.subr.bf16.mxu0 0
    %357 = vmatpush1.bf16.msra.mxu0 0
    %358 = vmatprep.subr.bf16.mxu0 0
    %359 = vmatpush1.bf16.msra.mxu0 0
    %360 = vmatprep.subr.bf16.mxu0 0
    %361 = vmatpush1.bf16.msra.mxu0 0
    %362 = vmatprep.subr.bf16.mxu0 0
    %363 = vmatpush1.bf16.msra.mxu0 0
    %364 = vmatprep.mubr.bf16.mxu0 0
    %365 = vmatmul.mubr.bf16.gmra.mrb[0].mxu0 %v74
    %v366 = vpop.f32.mrb[0].mxu0
    %v367 = vadd.f32 %v120, %v366
    %v368 = vpop.f32.mrb[0].mxu0
    %v369 = vadd.f32 %v124, %v368
    %v370 = vpop.f32.mrb[0].mxu0
    %v371 = vadd.f32 %v120, %v370
    %v372 = vpop.f32.mrb[0].mxu0
    %v373 = vadd.f32 %v124, %v372
    %374 = vdwg.mxu0
    %v375 = vmax.f32 %v324, 0.0
    %v376 = vmax.f32 %v326, 0.0
    %v377 = vmax.f32 %v367, 0.0
    %v378 = vmax.f32 %v369, 0.0
    %v379 = vmax.f32 %v328, 0.0
    %v380 = vmax.f32 %v330, 0.0
    %v381 = vmax.f32 %v371, 0.0
    %v382 = vmax.f32 %v373, 0.0
    %v383 = vld [vmem:[#allocation2] sm:$0xff]
    %v384 = vld [vmem:[#allocation2 + $0x8] sm:$0xff]
    %v385 = vpack.c.bf16 %v379, %v375
    %v386 = vpack.c.bf16 %v380, %v376
    %v387 = vpack.c.bf16 %v381, %v377
    %v388 = vpack.c.bf16 %v382, %v378
    %v389 = vld [vmem:[#allocation8] sm:$0xf]
    %v390 = vld [vmem:[#allocation8 + $0x4] sm:$0xf]
    %v391 = vld [vmem:[#allocation8 + $0x8] sm:$0xf]
    %v392 = vld [vmem:[#allocation8 + $0xc] sm:$0xf]
    %v393 = vld [vmem:[#allocation8 + $0x10] sm:$0xf]
    %v394 = vld [vmem:[#allocation8 + $0x14] sm:$0xf]
    %v395 = vld [vmem:[#allocation8 + $0x18] sm:$0xf]
    %v396 = vld [vmem:[#allocation8 + $0x1c] sm:$0xf]
    %v397 = vld [vmem:[#allocation8 + $0x20] sm:$0xf]
    %v398 = vld [vmem:[#allocation8 + $0x24] sm:$0xf]
    %v399 = vld [vmem:[#allocation8 + $0x28] sm:$0xf]
    %v400 = vld [vmem:[#allocation8 + $0x2c] sm:$0xf]
    %v401 = vld [vmem:[#allocation8 + $0x30] sm:$0xf]
    %v402 = vld [vmem:[#allocation8 + $0x34] sm:$0xf]
    %v403 = vld [vmem:[#allocation8 + $0x38] sm:$0xf]
    %v404 = vld [vmem:[#allocation8 + $0x3c] sm:$0xf]
    %v405 = vld [vmem:[#allocation8 + $0x40] sm:$0xf]
    %v406 = vld [vmem:[#allocation8 + $0x44] sm:$0xf]
    %v407 = vld [vmem:[#allocation8 + $0x48] sm:$0xf]
    %v408 = vld [vmem:[#allocation8 + $0x4c] sm:$0xf]
    %v409 = vld [vmem:[#allocation8 + $0x50] sm:$0xf]
    %v410 = vld [vmem:[#allocation8 + $0x54] sm:$0xf]
    %v411 = vld [vmem:[#allocation8 + $0x58] sm:$0xf]
    %v412 = vld [vmem:[#allocation8 + $0x5c] sm:$0xf]
    %v413 = vld [vmem:[#allocation8 + $0x60] sm:$0xf]
    %v414 = vld [vmem:[#allocation8 + $0x64] sm:$0xf]
    %v415 = vld [vmem:[#allocation8 + $0x68] sm:$0xf]
    %v416 = vld [vmem:[#allocation8 + $0x6c] sm:$0xf]
    %v417 = vld [vmem:[#allocation8 + $0x70] sm:$0xf]
    %v418 = vld [vmem:[#allocation8 + $0x74] sm:$0xf]
    %v419 = vld [vmem:[#allocation8 + $0x78] sm:$0xf]
    %v420 = vld [vmem:[#allocation8 + $0x7c] sm:$0xf]
    %v421 = vld [vmem:[#allocation8 + $0x80] sm:$0xf]
    %v422 = vld [vmem:[#allocation8 + $0x84] sm:$0xf]
    %v423 = vld [vmem:[#allocation8 + $0x88] sm:$0xf]
    %v424 = vld [vmem:[#allocation8 + $0x8c] sm:$0xf]
    %v425 = vld [vmem:[#allocation8 + $0x90] sm:$0xf]
    %v426 = vld [vmem:[#allocation8 + $0x94] sm:$0xf]
    %v427 = vld [vmem:[#allocation8 + $0x98] sm:$0xf]
    %v428 = vld [vmem:[#allocation8 + $0x9c] sm:$0xf]
    %v429 = vld [vmem:[#allocation8 + $0xa0] sm:$0xf]
    %v430 = vld [vmem:[#allocation8 + $0xa4] sm:$0xf]
    %v431 = vld [vmem:[#allocation8 + $0xa8] sm:$0xf]
    %v432 = vld [vmem:[#allocation8 + $0xac] sm:$0xf]
    %v433 = vld [vmem:[#allocation8 + $0xb0] sm:$0xf]
    %v434 = vld [vmem:[#allocation8 + $0xb4] sm:$0xf]
    %v435 = vld [vmem:[#allocation8 + $0xb8] sm:$0xf]
    %v436 = vld [vmem:[#allocation8 + $0xbc] sm:$0xf]
    %v437 = vld [vmem:[#allocation8 + $0xc0] sm:$0xf]
    %v438 = vld [vmem:[#allocation8 + $0xc4] sm:$0xf]
    %v439 = vld [vmem:[#allocation8 + $0xc8] sm:$0xf]
    %v440 = vld [vmem:[#allocation8 + $0xcc] sm:$0xf]
    %v441 = vld [vmem:[#allocation8 + $0xd0] sm:$0xf]
    %v442 = vld [vmem:[#allocation8 + $0xd4] sm:$0xf]
    %v443 = vld [vmem:[#allocation8 + $0xd8] sm:$0xf]
    %v444 = vld [vmem:[#allocation8 + $0xdc] sm:$0xf]
    %v445 = vld [vmem:[#allocation8 + $0xe0] sm:$0xf]
    %v446 = vld [vmem:[#allocation8 + $0xe4] sm:$0xf]
    %v447 = vld [vmem:[#allocation8 + $0xe8] sm:$0xf]
    %v448 = vld [vmem:[#allocation8 + $0xec] sm:$0xf]
    %v449 = vld [vmem:[#allocation8 + $0xf0] sm:$0xf]
    %v450 = vld [vmem:[#allocation8 + $0xf4] sm:$0xf]
    %v451 = vld [vmem:[#allocation8 + $0xf8] sm:$0xf]
    %v452 = vld [vmem:[#allocation8 + $0xfc] sm:$0xf]
    %v517 = vunpack.c.l.b16 %v389
    %v518 = vunpack.c.l.b16 %v390
    %v519 = vunpack.c.l.b16 %v391
    %v520 = vunpack.c.l.b16 %v392
    %v521 = vunpack.c.l.b16 %v393
    %v522 = vunpack.c.l.b16 %v394
    %v523 = vunpack.c.l.b16 %v395
    %v524 = vunpack.c.l.b16 %v396
    %v525 = vunpack.c.l.b16 %v397
    %v526 = vunpack.c.l.b16 %v398
    %v527 = vunpack.c.l.b16 %v399
    %v528 = vunpack.c.l.b16 %v400
    %v529 = vunpack.c.l.b16 %v401
    %v530 = vunpack.c.l.b16 %v402
    %v531 = vunpack.c.l.b16 %v403
    %v532 = vunpack.c.l.b16 %v404
    %v533 = vunpack.c.l.b16 %v405
    %v534 = vunpack.c.l.b16 %v406
    %v535 = vunpack.c.l.b16 %v407
    %v536 = vunpack.c.l.b16 %v408
    %v537 = vunpack.c.l.b16 %v409
    %v538 = vunpack.c.l.b16 %v410
    %v539 = vunpack.c.l.b16 %v411
    %v540 = vunpack.c.l.b16 %v412
    %v541 = vunpack.c.l.b16 %v413
    %v542 = vunpack.c.l.b16 %v414
    %v543 = vunpack.c.l.b16 %v415
    %v544 = vunpack.c.l.b16 %v416
    %v545 = vunpack.c.l.b16 %v417
    %v546 = vunpack.c.l.b16 %v418
    %v547 = vunpack.c.l.b16 %v419
    %v548 = vunpack.c.l.b16 %v420
    %v549 = vunpack.c.l.b16 %v421
    %v550 = vunpack.c.l.b16 %v422
    %v551 = vunpack.c.l.b16 %v423
    %v552 = vunpack.c.l.b16 %v424
    %v553 = vunpack.c.l.b16 %v425
    %v554 = vunpack.c.l.b16 %v426
    %v555 = vunpack.c.l.b16 %v427
    %v556 = vunpack.c.l.b16 %v428
    %v557 = vunpack.c.l.b16 %v429
    %v558 = vunpack.c.l.b16 %v430
    %v559 = vunpack.c.l.b16 %v431
    %v560 = vunpack.c.l.b16 %v432
    %v561 = vunpack.c.l.b16 %v433
    %v562 = vunpack.c.l.b16 %v434
    %v563 = vunpack.c.l.b16 %v435
    %v564 = vunpack.c.l.b16 %v436
    %v565 = vunpack.c.l.b16 %v437
    %v566 = vunpack.c.l.b16 %v438
    %v567 = vunpack.c.l.b16 %v439
    %v568 = vunpack.c.l.b16 %v440
    %v569 = vunpack.c.l.b16 %v441
    %v570 = vunpack.c.l.b16 %v442
    %v571 = vunpack.c.l.b16 %v443
    %v572 = vunpack.c.l.b16 %v444
    %v573 = vunpack.c.l.b16 %v445
    %v574 = vunpack.c.l.b16 %v446
    %v575 = vunpack.c.l.b16 %v447
    %v576 = vunpack.c.l.b16 %v448
    %v577 = vunpack.c.l.b16 %v449
    %v578 = vunpack.c.l.b16 %v450
    %v579 = vunpack.c.l.b16 %v451
    %v580 = vunpack.c.l.b16 %v452
    %v581 = vpack.c.b16 %v518, %v517
    %v582 = vpack.c.b16 %v520, %v519
    %v583 = vpack.c.b16 %v522, %v521
    %v584 = vpack.c.b16 %v524, %v523
    %v585 = vpack.c.b16 %v526, %v525
    %v586 = vpack.c.b16 %v528, %v527
    %v587 = vpack.c.b16 %v530, %v529
    %v588 = vpack.c.b16 %v532, %v531
    %v589 = vpack.c.b16 %v534, %v533
    %v590 = vpack.c.b16 %v536, %v535
    %v591 = vpack.c.b16 %v538, %v537
    %v592 = vpack.c.b16 %v540, %v539
    %v593 = vpack.c.b16 %v542, %v541
    %v594 = vpack.c.b16 %v544, %v543
    %v595 = vpack.c.b16 %v546, %v545
    %v596 = vpack.c.b16 %v548, %v547
    %v597 = vpack.c.b16 %v550, %v549
    %v598 = vpack.c.b16 %v552, %v551
    %v599 = vpack.c.b16 %v554, %v553
    %v600 = vpack.c.b16 %v556, %v555
    %v601 = vpack.c.b16 %v558, %v557
    %v602 = vpack.c.b16 %v560, %v559
    %v603 = vpack.c.b16 %v562, %v561
    %v604 = vpack.c.b16 %v564, %v563
    %v605 = vpack.c.b16 %v566, %v565
    %v606 = vpack.c.b16 %v568, %v567
    %v607 = vpack.c.b16 %v570, %v569
    %v608 = vpack.c.b16 %v572, %v571
    %v609 = vpack.c.b16 %v574, %v573
    %v610 = vpack.c.b16 %v576, %v575
    %v611 = vpack.c.b16 %v578, %v577
    %v612 = vpack.c.b16 %v580, %v579
    %645 = vmatprep.subr.bf16.mxu0 0
    %646 = vmatpush1.bf16.msra.mxu0 %v581
    %647 = vmatprep.subr.bf16.mxu0 0
    %648 = vmatpush1.bf16.msra.mxu0 %v582
    %649 = vmatprep.subr.bf16.mxu0 0
    %650 = vmatpush1.bf16.msra.mxu0 %v583
    %651 = vmatprep.subr.bf16.mxu0 0
    %652 = vmatpush1.bf16.msra.mxu0 %v584
    %653 = vmatprep.subr.bf16.mxu0 0
    %654 = vmatpush1.bf16.msra.mxu0 %v585
    %655 = vmatprep.subr.bf16.mxu0 0
    %656 = vmatpush1.bf16.msra.mxu0 %v586
    %657 = vmatprep.subr.bf16.mxu0 0
    %658 = vmatpush1.bf16.msra.mxu0 %v587
    %659 = vmatprep.subr.bf16.mxu0 0
    %660 = vmatpush1.bf16.msra.mxu0 %v588
    %661 = vmatprep.subr.bf16.mxu0 0
    %662 = vmatpush1.bf16.msra.mxu0 %v589
    %663 = vmatprep.subr.bf16.mxu0 0
    %664 = vmatpush1.bf16.msra.mxu0 %v590
    %665 = vmatprep.subr.bf16.mxu0 0
    %666 = vmatpush1.bf16.msra.mxu0 %v591
    %667 = vmatprep.subr.bf16.mxu0 0
    %668 = vmatpush1.bf16.msra.mxu0 %v592
    %669 = vmatprep.subr.bf16.mxu0 0
    %670 = vmatpush1.bf16.msra.mxu0 %v593
    %671 = vmatprep.subr.bf16.mxu0 0
    %672 = vmatpush1.bf16.msra.mxu0 %v594
    %673 = vmatprep.subr.bf16.mxu0 0
    %674 = vmatpush1.bf16.msra.mxu0 %v595
    %675 = vmatprep.subr.bf16.mxu0 0
    %676 = vmatpush1.bf16.msra.mxu0 %v596
    %677 = vmatprep.mubr.bf16.mxu0 %v386
    %678 = vmatmul.mubr.bf16.gmra.mrb[0].mxu0 %v385
    %v679 = vpop.f32.mrb[0].mxu0
    %v680 = vadd.f32 0.0, %v679
    %v681 = vpop.f32.mrb[0].mxu0
    %v682 = vpop.f32.mrb[0].mxu0
    %v683 = vadd.f32 0.0, %v682
    %v684 = vpop.f32.mrb[0].mxu0
    %685 = vdwg.mxu0
    %686 = vmatprep.subr.bf16.mxu0 0
    %687 = vmatpush1.bf16.msra.mxu0 %v597
    %688 = vmatprep.subr.bf16.mxu0 0
    %689 = vmatpush1.bf16.msra.mxu0 %v598
    %690 = vmatprep.subr.bf16.mxu0 0
    %691 = vmatpush1.bf16.msra.mxu0 %v599
    %692 = vmatprep.subr.bf16.mxu0 0
    %693 = vmatpush1.bf16.msra.mxu0 %v600
    %694 = vmatprep.subr.bf16.mxu0 0
    %695 = vmatpush1.bf16.msra.mxu0 %v601
    %696 = vmatprep.subr.bf16.mxu0 0
    %697 = vmatpush1.bf16.msra.mxu0 %v602
    %698 = vmatprep.subr.bf16.mxu0 0
    %699 = vmatpush1.bf16.msra.mxu0 %v603
    %700 = vmatprep.subr.bf16.mxu0 0
    %701 = vmatpush1.bf16.msra.mxu0 %v604
    %702 = vmatprep.subr.bf16.mxu0 0
    %703 = vmatpush1.bf16.msra.mxu0 %v605
    %704 = vmatprep.subr.bf16.mxu0 0
    %705 = vmatpush1.bf16.msra.mxu0 %v606
    %706 = vmatprep.subr.bf16.mxu0 0
    %707 = vmatpush1.bf16.msra.mxu0 %v607
    %708 = vmatprep.subr.bf16.mxu0 0
    %709 = vmatpush1.bf16.msra.mxu0 %v608
    %710 = vmatprep.subr.bf16.mxu0 0
    %711 = vmatpush1.bf16.msra.mxu0 %v609
    %712 = vmatprep.subr.bf16.mxu0 0
    %713 = vmatpush1.bf16.msra.mxu0 %v610
    %714 = vmatprep.subr.bf16.mxu0 0
    %715 = vmatpush1.bf16.msra.mxu0 %v611
    %716 = vmatprep.subr.bf16.mxu0 0
    %717 = vmatpush1.bf16.msra.mxu0 %v612
    %718 = vmatprep.mubr.bf16.mxu0 %v388
    %719 = vmatmul.mubr.bf16.gmra.mrb[0].mxu0 %v387
    %v720 = vpop.f32.mrb[0].mxu0
    %v721 = vadd.f32 %v680, %v720
    %v722 = vpop.f32.mrb[0].mxu0
    %v723 = vpop.f32.mrb[0].mxu0
    %v724 = vadd.f32 %v683, %v723
    %v725 = vpop.f32.mrb[0].mxu0
    %726 = vdwg.mxu0
    %v727 = vadd.f32 %v383, %v721
    %v728 = vadd.f32 %v384, %v724
    %729 = vst [vmem:[#allocation2] sm:$0xff] %v727
    %730 = vst [vmem:[#allocation2 + $0x8] sm:$0xff] %v728
    %v731 = vld [vmem:[#allocation2] sm:$0xff]
    %v732 = vld [vmem:[#allocation2 + $0x8] sm:$0xff]
    %733 = vst [vmem:[#allocation9] sm:$0xff] %v731
    %734 = vst [vmem:[#allocation9 + $0x8] sm:$0xff] %v732
    // Predicated region
    $region34: #{tpu_custom_call.1} parent=1 // pred_check
      _
    $region35: #{tpu_custom_call.1} parent=1 // pred_check_branch
      %736 = sbr.rel (0) target = $region37
    $region36: #{tpu_custom_call.1} parent=1 // pred_region
      %s738 = ssub.s32 256, 256
      %739 = vsyncadd [#allocation5], %s738
      %s740 = sshll.u32 [#allocation9], 4
      %s741 = int_to_ptr.vmem [resolvable:$true] %s740
      %746 = dma.vmem_to_hbm [thread:$0]  %s741, 256, %s5, [#allocation5], 128, 128, 8
    $region37: #{tpu_custom_call.1} parent=1 // pred_fallthru
      _
    // Predicated region
    $region38: #{tpu_custom_call.1} parent=1 // pred_check
      _
    $region39: #{tpu_custom_call.1} parent=1 // pred_check_branch
      %748 = sbr.rel (0) target = $region41
    $region40: #{tpu_custom_call.1} parent=1 // pred_region
      %749 = dma.done [#allocation5], 256
    $region41: #{tpu_custom_call.1} parent=1 // pred_fallthru
      _
    %750 = vsyncpa [#allocation4], 1
    %751 = vsyncpa [#allocation7], 1
    %752 = vsyncpa [#allocation5], 1

</llo_original>
